<compile_context>
chip_gen: v6e
topology: v6e:2x2x1
jax: 0.10.0
libtpu: 0.0.40
codegen_flags: <defaults>
</compile_context>

<pallas_src>
import functools

import jax
import jax.numpy as jnp
from jax.experimental import pallas as pl
from jax.experimental.pallas import tpu as pltpu

_LANE = 128          # classifier output padded to a full vreg lane width
_NUM_CLASSES = 2     # real classifier width


def _round_up(x, m):
    return ((x + m - 1) // m) * m


def prepare_cross_exit_params(w1, b1, w2, b2, *, matmul_dtype=jnp.float32):
    """Fold ffn + classifier into one (h_dim, 128) weight / (1, 128) bias.

    Call once at init time (weights are static across forward calls); the
    per-call kernel then only moves state + the tiny composed weight.
    Pass matmul_dtype=jnp.bfloat16 to halve the resident weight (recommended
    on v7x, and whenever the activations are bf16); keep f32 for strict
    parity with the PyTorch reference.
    """
    w1 = jnp.asarray(w1, jnp.float32)   # (ffn, h_dim)
    b1 = jnp.asarray(b1, jnp.float32)   # (ffn,)
    w2 = jnp.asarray(w2, jnp.float32)   # (2, ffn)
    b2 = jnp.asarray(b2, jnp.float32)   # (2,)
    W = (w2 @ w1).T                     # (h_dim, 2)  == w1.T @ w2.T
    b = b1 @ w2.T + b2                  # (2,)
    h_dim = W.shape[0]
    W_pad = jnp.zeros((h_dim, _LANE), jnp.float32).at[:, :_NUM_CLASSES].set(W)
    b_pad = jnp.zeros((1, _LANE), jnp.float32).at[:, :_NUM_CLASSES].set(b)
    # Bias stays f32 (added after f32 accumulation); weight may be bf16.
    return W_pad.astype(matmul_dtype), b_pad


# --------------------------------------------------------------------------
# Kernels
# --------------------------------------------------------------------------

def _affine_f32(state_ref, w_ref, b_ref):
    """(tb, H) @ (H, 128) on the MXU with f32 accumulation, plus bias."""
    w = w_ref[...]
    if w.dtype != state_ref.dtype:
        # Only the tiny resident weight is ever cast in-vreg; the dominant
        # state stream keeps its HBM dtype.
        w = w.astype(state_ref.dtype)
    return (jnp.dot(state_ref[...], w, preferred_element_type=jnp.float32)
            + b_ref[...])


def _bce_tile_sum(x, labels_ref, batch, tile_b):
    """Per-tile BCE-with-logits partial sum, broadcast into a (1,1,128) block."""
    i = pl.program_id(0)
    x2 = x[:, :_NUM_CLASSES]                      # (tb, 2) f32, real lanes only
    z = labels_ref[...].astype(jnp.float32)       # (tb, 2)
    # Stable BCEWithLogits: max(x,0) - x*z + log1p(exp(-|x|))
    elem = jnp.maximum(x2, 0.0) - x2 * z + jnp.log1p(jnp.exp(-jnp.abs(x2)))
    # Mask rows past the real batch (tail tile reads OOB garbage).
    row = i * tile_b + jax.lax.broadcasted_iota(jnp.int32, x2.shape, 0)
    masked = jnp.where(row < batch, elem, 0.0)
    tile_sum = jnp.sum(masked, keepdims=True)     # (1, 1)
    return jnp.broadcast_to(tile_sum[None], (1, 1, _LANE))


def _fwd_kernel(state_ref, w_ref, b_ref, logits_ref):
    logits_ref[...] = _affine_f32(state_ref, w_ref, b_ref).astype(logits_ref.dtype)


def _fwd_loss_kernel(state_ref, w_ref, b_ref, labels_ref, logits_ref, loss_ref,
                     *, batch, tile_b):
    x = _affine_f32(state_ref, w_ref, b_ref)
    logits_ref[...] = x.astype(logits_ref.dtype)
    loss_ref[...] = _bce_tile_sum(x, labels_ref, batch, tile_b)


def _loss_only_kernel(state_ref, w_ref, b_ref, labels_ref, loss_ref,
                      *, batch, tile_b):
    x = _affine_f32(state_ref, w_ref, b_ref)
    loss_ref[...] = _bce_tile_sum(x, labels_ref, batch, tile_b)


# --------------------------------------------------------------------------
# Wrapper
# --------------------------------------------------------------------------

def _min_sublane(dtype):
    # f32 -> 8 rows, bf16 -> 16, int8/fp8 -> 32 (min second-to-last tile dim)
    return max(8, 32 // jnp.dtype(dtype).itemsize)


def cross_exit_forward(state, w_fused, b_fused, labels=None, *,
                       tile_b=None, need_scores=True,
                       scores_dtype=jnp.float32, vmem_budget_bytes=None):
    """Pallas-backed CrossExitModel.forward.

    Args:
      state:    (B, h_dim), f32 or bf16 (streamed in its own dtype).
      w_fused:  (h_dim, 128) composed+padded weight from prepare_cross_exit_params.
      b_fused:  (1, 128)     composed+padded f32 bias.
      labels:   optional (B, 2) targets.
      tile_b:   optional batch-tile override (otherwise VMEM-budget sized).
      need_scores: if False (and labels given), skip the logits writeback.
      scores_dtype: dtype of the exit scores (bf16 halves the output slab).
    Returns:
      (exit_scores (B, 2) or None, loss scalar or None)
    """
    state = jnp.asarray(state)                    # dtype preserved, no cast pass
    B, H = state.shape
    has_labels = labels is not None
    if not need_scores and not has_labels:
        raise ValueError("need_scores=False requires labels")
    scores_dtype = jnp.dtype(scores_dtype)

    if has_labels:
        labels = jnp.asarray(labels)
        if not jnp.issubdtype(labels.dtype, jnp.floating):
            labels = labels.astype(jnp.float32)

    # ---- dtype-aware sublane floor over every streamed tile ----
    sub = _min_sublane(state.dtype)
    if need_scores:
        sub = max(sub, _min_sublane(scores_dtype))
    if has_labels:
        sub = max(sub, _min_sublane(labels.dtype))

    # ---- per-generation VMEM budget ----
    if vmem_budget_bytes is None:
        try:
            vmem_budget_bytes = int(pltpu.get_tpu_info().vmem_capacity_bytes) * 3 // 4
        except Exception:
            vmem_budget_bytes = 48 << 20          # safe even on v7x (64 MiB physical)

    # VMEM footprint per batch row (double-buffered, lane-padded to 128)
    h_vmem = _round_up(H, _LANE)
    per_row_vmem = 2 * h_vmem * state.dtype.itemsize
    if need_scores:
        per_row_vmem += 2 * _LANE * scores_dtype.itemsize
    if has_labels:
        per_row_vmem += 2 * _LANE * labels.dtype.itemsize   # (tb,2) pads to 128 lanes
    w_bytes_vmem = _round_up(H, 8) * _LANE * w_fused.dtype.itemsize
    fixed_vmem = 2 * (w_bytes_vmem + _LANE * 4)             # weight + bias blocks
    if has_labels:
        fixed_vmem += 2 * _LANE * 4                         # per-tile loss block

    avail = max(vmem_budget_bytes - fixed_vmem - (2 << 20), per_row_vmem * sub)
    tb_budget = max(sub, (avail // per_row_vmem) // sub * sub)

    # ---- batch tile: big enough to amortize grid overhead, small enough for
    #      the VMEM budget, and (auto mode) >= 2 tiles so v7x's 2nd TC works ----
    if tile_b is None:
        tb = min(tb_budget, 2048, max(sub, _round_up(-(-B // 2), sub)))
    else:
        tb = min(tb_budget, max(sub, _round_up(tile_b, sub)), _round_up(B, sub))
    tb = max(sub, (tb // sub) * sub)
    n_tiles = pl.cdiv(B, tb)

    need_vmem = tb * per_row_vmem + fixed_vmem + (2 << 20)  # + compiler scratch slack
    vmem_limit = int(max(min(vmem_budget_bytes, need_vmem + (8 << 20)), need_vmem))

    cparams = pltpu.CompilerParams(
        dimension_semantics=("parallel",),
        vmem_limit_bytes=vmem_limit,
    )

    state_spec = pl.BlockSpec((tb, H), lambda i: (i, 0))
    w_spec = pl.BlockSpec((H, _LANE), lambda i: (0, 0))
    b_spec = pl.BlockSpec((1, _LANE), lambda i: (0, 0))
    logits_spec = pl.BlockSpec((tb, _LANE), lambda i: (i, 0))
    labels_spec = pl.BlockSpec((tb, _NUM_CLASSES), lambda i: (i, 0))
    loss_spec = pl.BlockSpec((1, 1, _LANE), lambda i: (i, 0, 0))

    flops = 2 * n_tiles * tb * H * _LANE
    bytes_in = (B * H * state.dtype.itemsize
                + w_fused.size * w_fused.dtype.itemsize
                + b_fused.size * b_fused.dtype.itemsize)

    # ---- inference path: no labels DMA, no BCE work, no loss output ----
    if not has_labels:
        cost = pl.CostEstimate(
            flops=flops, transcendentals=0,
            bytes_accessed=bytes_in + B * _LANE * scores_dtype.itemsize)
        logits_full = pl.pallas_call(
            _fwd_kernel,
            grid=(n_tiles,),
            in_specs=[state_spec, w_spec, b_spec],
            out_specs=logits_spec,
            out_shape=jax.ShapeDtypeStruct((B, _LANE), scores_dtype),
            compiler_params=cparams,
            cost_estimate=cost,
        )(state, w_fused, b_fused)
        return logits_full[:, :_NUM_CLASSES], None

    bytes_train = (bytes_in + B * _NUM_CLASSES * labels.dtype.itemsize
                   + n_tiles * _LANE * 4)
    trans = 2 * n_tiles * tb * _NUM_CLASSES       # exp + log1p on the 2 real lanes

    if need_scores:
        kernel = functools.partial(_fwd_loss_kernel, batch=B, tile_b=tb)
        cost = pl.CostEstimate(
            flops=flops, transcendentals=trans,
            bytes_accessed=bytes_train + B * _LANE * scores_dtype.itemsize)
        logits_full, loss_partial = pl.pallas_call(
            kernel,
            grid=(n_tiles,),
            in_specs=[state_spec, w_spec, b_spec, labels_spec],
            out_specs=(logits_spec, loss_spec),
            out_shape=(jax.ShapeDtypeStruct((B, _LANE), scores_dtype),
                       jax.ShapeDtypeStruct((n_tiles, 1, _LANE), jnp.float32)),
            compiler_params=cparams,
            cost_estimate=cost,
        )(state, w_fused, b_fused, labels)
        loss = jnp.sum(loss_partial[:, 0, 0]) / (B * _NUM_CLASSES)
        return logits_full[:, :_NUM_CLASSES], loss

    # ---- loss-only path: no logits writeback at all ----
    kernel = functools.partial(_loss_only_kernel, batch=B, tile_b=tb)
    cost = pl.CostEstimate(flops=flops, transcendentals=trans,
                           bytes_accessed=bytes_train)
    loss_partial = pl.pallas_call(
        kernel,
        grid=(n_tiles,),
        in_specs=[state_spec, w_spec, b_spec, labels_spec],
        out_specs=loss_spec,
        out_shape=jax.ShapeDtypeStruct((n_tiles, 1, _LANE), jnp.float32),
        compiler_params=cparams,
        cost_estimate=cost,
    )(state, w_fused, b_fused, labels)
    loss = jnp.sum(loss_partial[:, 0, 0]) / (B * _NUM_CLASSES)
    return None, loss


# --------------------------------------------------------------------------
# Reference + self-test
# --------------------------------------------------------------------------

def _reference(state, w1, b1, w2, b2, labels):
    v = state @ w1.T + b1
    logits = v @ w2.T + b2
    x, z = logits, labels
    loss = jnp.mean(jnp.maximum(x, 0.0) - x * z + jnp.log1p(jnp.exp(-jnp.abs(x))))
    return logits, loss


if __name__ == "__main__":
    # Small config: num_qa_labels (h_dim) = 32, ffn_size = 64, batch = 8.
    B, H_DIM, FFN = 8, 32, 64

    key = jax.random.PRNGKey(0)
    ks = jax.random.split(key, 10)

    state = jax.random.normal(ks[0], (B, H_DIM), jnp.float32)
    lim1, lim2 = 1.0 / H_DIM ** 0.5, 1.0 / FFN ** 0.5
    w1 = jax.random.uniform(ks[1], (FFN, H_DIM), jnp.float32, -lim1, lim1)
    b1 = jax.random.uniform(ks[2], (FFN,), jnp.float32, -lim1, lim1)
    w2 = jax.random.uniform(ks[3], (2, FFN), jnp.float32, -lim2, lim2)
    b2 = jax.random.uniform(ks[4], (2,), jnp.float32, -lim2, lim2)
    labels = (jax.random.uniform(ks[5], (B, 2)) > 0.5).astype(jnp.float32)

    W_f32, bias_f = prepare_cross_exit_params(w1, b1, w2, b2)
    ref_logits, ref_loss = _reference(state, w1, b1, w2, b2, labels)

    # A: f32 training path (scores + loss), exact-parity check.
    logits, loss = cross_exit_forward(state, W_f32, bias_f, labels=labels)
    jax.block_until_ready((logits, loss))
    assert jnp.allclose(logits, ref_logits, atol=1e-4, rtol=1e-4)
    assert jnp.allclose(loss, ref_loss, atol=1e-4, rtol=1e-4)

    # B: inference path (labels=None -> no BCE work, loss is None).
    logits_nl, loss_nl = cross_exit_forward(state, W_f32, bias_f, labels=None)
    jax.block_until_ready(logits_nl)
    assert loss_nl is None
    assert jnp.allclose(logits_nl, ref_logits, atol=1e-4, rtol=1e-4)

    # C: ragged multi-tile f32 (auto tiling -> 2 tiles, tail rows handled
    #    in-kernel, no wrapper-side padding pass).
    B3 = 40
    state3 = jax.random.normal(ks[6], (B3, H_DIM), jnp.float32)
    labels3 = (jax.random.uniform(ks[7], (B3, 2)) > 0.5).astype(jnp.float32)
    logits3, loss3 = cross_exit_forward(state3, W_f32, bias_f, labels=labels3)
    jax.block_until_ready((logits3, loss3))
    ref_logits3, ref_loss3 = _reference(state3, w1, b1, w2, b2, labels3)
    assert jnp.allclose(logits3, ref_logits3, atol=1e-4, rtol=1e-4)
    assert jnp.allclose(loss3, ref_loss3, atol=1e-4, rtol=1e-4)

    # D: bf16 fused weight with f32 state (weight up-cast in-kernel, dominant
    #    stream untouched), explicit small tile -> 2 ragged tiles.
    W_bf16, bias_bf = prepare_cross_exit_params(w1, b1, w2, b2,
                                                matmul_dtype=jnp.bfloat16)
    B2 = 10
    state2 = jax.random.normal(ks[8], (B2, H_DIM), jnp.float32)
    labels2 = (jax.random.uniform(ks[9], (B2, 2)) > 0.5).astype(jnp.float32)
    logits2, loss2 = cross_exit_forward(state2, W_bf16, bias_bf,
                                        labels=labels2, tile_b=8)
    jax.block_until_ready((logits2, loss2))
    ref_logits2, ref_loss2 = _reference(state2, w1, b1, w2, b2, labels2)
    assert jnp.allclose(logits2, ref_logits2, atol=2e-2, rtol=2e-2)
    assert jnp.allclose(loss2, ref_loss2, atol=2e-2, rtol=2e-2)

    # E: bf16 end-to-end (bf16 state stream, bf16 weight, bf16 scores slab).
    logits4, loss4 = cross_exit_forward(state2.astype(jnp.bfloat16), W_bf16,
                                        bias_bf, labels=labels2,
                                        scores_dtype=jnp.bfloat16)
    jax.block_until_ready((logits4, loss4))
    assert jnp.allclose(logits4.astype(jnp.float32), ref_logits2,
                        atol=5e-2, rtol=5e-2)
    assert jnp.allclose(loss4, ref_loss2, atol=5e-2, rtol=5e-2)

    # F: loss-only variant (skips the logits writeback entirely).
    scores_none, loss_only = cross_exit_forward(state, W_f32, bias_f,
                                                labels=labels, need_scores=False)
    jax.block_until_ready(loss_only)
    assert scores_none is None
    assert jnp.allclose(loss_only, ref_loss, atol=1e-4, rtol=1e-4)

    print("KERNEL_OK")
</pallas_src>

<mosaic_0001>
module attributes {stable_mosaic.version = 11 : i64} {
  func.func @_fwd_loss_kernel(%arg0: i32, %arg1: memref<8x32xf32, #tpu.memory_space<vmem>>, %arg2: memref<32x128xf32, #tpu.memory_space<vmem>>, %arg3: memref<1x128xf32, #tpu.memory_space<vmem>>, %arg4: memref<8x2xf32, #tpu.memory_space<vmem>>, %arg5: memref<8x128xf32, #tpu.memory_space<vmem>>, %arg6: memref<1x1x128xf32, #tpu.memory_space<vmem>>) attributes {dimension_semantics = [#tpu.dimension_semantics<parallel>], iteration_bounds = array<i64: 1>, scalar_prefetch = 0 : i64, scratch_operands = 0 : i64, tpu.core_type = #tpu.core_type<tc>, window_params = [{transform_indices = @transform_0, window_bounds = array<i64: 8, 32>}, {pipeline_mode = #tpu.pipeline_mode<synchronous>, transform_indices = @transform_1, window_bounds = array<i64: 32, 128>}, {pipeline_mode = #tpu.pipeline_mode<synchronous>, transform_indices = @transform_2, window_bounds = array<i64: 1, 128>}, {transform_indices = @transform_3, window_bounds = array<i64: 8, 2>}, {transform_indices = @transform_4, window_bounds = array<i64: 8, 128>}, {transform_indices = @transform_5, window_bounds = array<i64: 1, 1, 128>}]} {
    %c0 = arith.constant 0 : index
    %c0_0 = arith.constant 0 : index
    %0 = vector.load %arg2[%c0, %c0_0] : memref<32x128xf32, #tpu.memory_space<vmem>>, vector<32x128xf32>
    %c0_1 = arith.constant 0 : index
    %c0_2 = arith.constant 0 : index
    %1 = vector.load %arg1[%c0_1, %c0_2] : memref<8x32xf32, #tpu.memory_space<vmem>>, vector<8x32xf32>
    %cst = arith.constant dense<0.000000e+00> : vector<8x128xf32>
    %2 = tpu.matmul %1, %0, %cst {dimension_numbers = #tpu.dot_dimension_numbers<[1], [0], [0], [1], [0, 0, 1, 1], [], []>} : vector<8x32xf32>, vector<32x128xf32>, vector<8x128xf32> -> vector<8x128xf32>
    %c0_3 = arith.constant 0 : index
    %c0_4 = arith.constant 0 : index
    %3 = vector.load %arg3[%c0_3, %c0_4] : memref<1x128xf32, #tpu.memory_space<vmem>>, vector<1x128xf32>
    %4 = vector.broadcast %3 : vector<1x128xf32> to vector<8x128xf32>
    %5 = arith.addf %2, %4 : vector<8x128xf32>
    %c0_5 = arith.constant 0 : index
    %c0_6 = arith.constant 0 : index
    %6 = vector.load %arg5[%c0_5, %c0_6] : memref<8x128xf32, #tpu.memory_space<vmem>>, vector<8x128xf32>
    tpu.vector_store %arg5[%c0_5, %c0_6], %5 {strides = array<i32>} : memref<8x128xf32, #tpu.memory_space<vmem>>, vector<8x128xf32>,
    %7 = vector.extract_strided_slice %5 {offsets = [0, 0], sizes = [8, 2], strides = [1, 1]} : vector<8x128xf32> to vector<8x2xf32>
    %c0_7 = arith.constant 0 : index
    %c0_8 = arith.constant 0 : index
    %8 = vector.load %arg4[%c0_7, %c0_8] : memref<8x2xf32, #tpu.memory_space<vmem>>, vector<8x2xf32>
    %cst_9 = arith.constant 0.000000e+00 : f32
    %9 = vector.broadcast %cst_9 : f32 to vector<8x2xf32>
    %10 = arith.maximumf %7, %9 : vector<8x2xf32>
    %11 = arith.mulf %7, %8 : vector<8x2xf32>
    %12 = arith.subf %10, %11 : vector<8x2xf32>
    %13 = math.absf %7 : vector<8x2xf32>
    %cst_10 = arith.constant 0.000000e+00 : f32
    %14 = vector.broadcast %cst_10 : f32 to vector<8x2xf32>
    %15 = arith.subf %14, %13 : vector<8x2xf32>
    %16 = math.exp %15 : vector<8x2xf32>
    %17 = math.log1p %16 : vector<8x2xf32>
    %18 = arith.addf %12, %17 : vector<8x2xf32>
    %c8_i32 = arith.constant 8 : i32
    %19 = arith.muli %arg0, %c8_i32 : i32
    %20 = tpu.iota {dimensions = array<i32: 0>} : vector<8x2xi32>
    %21 = vector.broadcast %19 : i32 to vector<8x2xi32>
    %22 = arith.addi %21, %20 : vector<8x2xi32>
    %c8_i32_11 = arith.constant 8 : i32
    %23 = vector.broadcast %c8_i32_11 : i32 to vector<8x2xi32>
    %24 = arith.cmpi slt, %22, %23 : vector<8x2xi32>
    %cst_12 = arith.constant 0.000000e+00 : f32
    %25 = vector.broadcast %cst_12 : f32 to vector<8x2xf32>
    %26 = arith.select %24, %18, %25 : vector<8x2xi1>, vector<8x2xf32>
    %27 = vector.shape_cast %26 : vector<8x2xf32> to vector<1x8x2xf32>
    %cst_13 = arith.constant dense<0.000000e+00> : vector<1xf32>
    %28 = vector.multi_reduction <add>, %27, %cst_13 [1, 2] : vector<1x8x2xf32> to vector<1xf32>
    %29 = vector.shape_cast %28 : vector<1xf32> to vector<1x1x1xf32>
    %30 = vector.extract %29[0, 0, 0] : f32 from vector<1x1x1xf32>
    %31 = vector.broadcast %30 : f32 to vector<1x1xf32>
    %32 = vector.shape_cast %31 : vector<1x1xf32> to vector<1x1x1xf32>
    %33 = vector.shape_cast %32 : vector<1x1x1xf32> to vector<1x1x1xf32>
    %34 = vector.broadcast %33 : vector<1x1x1xf32> to vector<1x1x128xf32>
    %c0_14 = arith.constant 0 : index
    %c0_15 = arith.constant 0 : index
    %c0_16 = arith.constant 0 : index
    %35 = vector.load %arg6[%c0_14, %c0_15, %c0_16] : memref<1x1x128xf32, #tpu.memory_space<vmem>>, vector<1x1x128xf32>
    tpu.vector_store %arg6[%c0_14, %c0_15, %c0_16], %34 {strides = array<i32>} : memref<1x1x128xf32, #tpu.memory_space<vmem>>, vector<1x1x128xf32>,
    return
  }
  func.func @transform_0(%arg0: i32) -> (i32, i32) {
    %c0_i32 = arith.constant 0 : i32
    %c0_i32_0 = arith.constant 0 : i32
    return %arg0, %c0_i32 : i32, i32
  }
  func.func @transform_1(%arg0: i32) -> (i32, i32) {
    %c0_i32 = arith.constant 0 : i32
    %c0_i32_0 = arith.constant 0 : i32
    %c0_i32_1 = arith.constant 0 : i32
    return %c0_i32, %c0_i32_0 : i32, i32
  }
  func.func @transform_2(%arg0: i32) -> (i32, i32) {
    %c0_i32 = arith.constant 0 : i32
    %c0_i32_0 = arith.constant 0 : i32
    %c0_i32_1 = arith.constant 0 : i32
    return %c0_i32, %c0_i32_0 : i32, i32
  }
  func.func @transform_3(%arg0: i32) -> (i32, i32) {
    %c0_i32 = arith.constant 0 : i32
    %c0_i32_0 = arith.constant 0 : i32
    return %arg0, %c0_i32 : i32, i32
  }
  func.func @transform_4(%arg0: i32) -> (i32, i32) {
    %c0_i32 = arith.constant 0 : i32
    %c0_i32_0 = arith.constant 0 : i32
    return %arg0, %c0_i32 : i32, i32
  }
  func.func @transform_5(%arg0: i32) -> (i32, i32, i32) {
    %c0_i32 = arith.constant 0 : i32
    %c0_i32_0 = arith.constant 0 : i32
    %c0_i32_1 = arith.constant 0 : i32
    return %arg0, %c0_i32, %c0_i32_0 : i32, i32, i32
  }
}

</mosaic_0001>

<llo_original>
// kernel: tpu_custom_call.1
$region0: #{tpu_custom_call.1}
  #allocation0 [shape = 'u32[]', space=smem, size = 0x4, offset = 0x4, fixed_abs, tag = 'smem constant byte address 0x4 - core index']
  #allocation1 [shape = 'u32[144,128]{1,0:T(1,128)}', space=vmem, size = 0x12000, scoped, tag = 'internal scratch']
  %s0 = inlined_call_operand.vmem [shape: f32[8,32], index: 0, kind: input, shape index: {}]
  %s1 = inlined_call_operand.hbm [shape: f32[32,128], index: 1, kind: input, shape index: {}]
  %s2 = inlined_call_operand.vmem [shape: f32[1,128], index: 2, kind: input, shape index: {}]
  %s3 = inlined_call_operand.vmem [shape: f32[8,2], index: 3, kind: input, shape index: {}]
  %s4 = inlined_call_operand.hbm [shape: f32[8,128], index: 4, kind: output, shape index: {0}]
  %s5 = inlined_call_operand.hbm [shape: f32[1,1,128], index: 5, kind: output, shape index: {1}]
  %6 = xla_tuple %s4, %s5
  %s7 = sld [smem:[#allocation0]]
  $region38: #{tpu_custom_call.1} parent=0
    _
  %s9 = ssub.s32 1, %s7
  %s10 = scalar_select 0, %s9, %s7
  $region1: #{tpu_custom_call.1} parent=0
    #allocation2 [shape = 'u8[16384]{0}', space=vmem, size = 0x4000, scoped, tag = 'input window, operand 1, single buffered']
    #allocation3 [shape = 's32[1]{0}', space=sflag, size = 0x4, scoped, tag = 'scoped memory for tpu_custom_call.1']
    #allocation4 [shape = 's32[1]{0}', space=sflag, size = 0x4, scoped, tag = 'scoped memory for tpu_custom_call.1']
    #allocation5 [shape = 'u8[4096]{0}', space=vmem, size = 0x1000, scoped, tag = 'output window, operand 0, single buffered']
    #allocation6 [shape = 'u8[512]{0}', space=vmem, size = 0x400, scoped, tag = 'output window, operand 1, single buffered']
    #allocation7 [shape = 's32[1]{0}', space=sflag, size = 0x4, scoped, tag = 'scoped memory for tpu_custom_call.1']
    %11 = vsyncpa [#allocation3], 0
    %12 = vsyncpa [#allocation4], 0
    %13 = vsyncpa [#allocation7], 0
    // Predicated region
    $region2: #{tpu_custom_call.1} parent=1 // pred_check
      _
    $region3: #{tpu_custom_call.1} parent=1 // pred_check_branch
      %15 = sbr.rel (0) target = $region5
    $region4: #{tpu_custom_call.1} parent=1 // pred_region
      _
    $region5: #{tpu_custom_call.1} parent=1 // pred_fallthru
      _
    // Predicated region
    $region6: #{tpu_custom_call.1} parent=1 // pred_check
      _
    $region7: #{tpu_custom_call.1} parent=1 // pred_check_branch
      %17 = sbr.rel (0) target = $region9
    $region8: #{tpu_custom_call.1} parent=1 // pred_region
      %s19 = ssub.s32 512, 512
      %20 = vsyncadd [#allocation3], %s19
      %s21 = sshll.u32 [#allocation2], 4
      %s22 = int_to_ptr.vmem [resolvable:$true] %s21
      %27 = dma.hbm_to_vmem [thread:$0]  %s1, 512, %s22, [#allocation3], 128, 128, 8
    $region9: #{tpu_custom_call.1} parent=1 // pred_fallthru
      _
    // Predicated region
    $region10: #{tpu_custom_call.1} parent=1 // pred_check
      _
    $region11: #{tpu_custom_call.1} parent=1 // pred_check_branch
      %29 = sbr.rel (0) target = $region13
    $region12: #{tpu_custom_call.1} parent=1 // pred_region
      _
    $region13: #{tpu_custom_call.1} parent=1 // pred_fallthru
      _
    // Predicated region
    $region14: #{tpu_custom_call.1} parent=1 // pred_check
      _
    $region15: #{tpu_custom_call.1} parent=1 // pred_check_branch
      %31 = sbr.rel (0) target = $region17
    $region16: #{tpu_custom_call.1} parent=1 // pred_region
      _
    $region17: #{tpu_custom_call.1} parent=1 // pred_fallthru
      _
    // Predicated region
    $region18: #{tpu_custom_call.1} parent=1 // pred_check
      _
    $region19: #{tpu_custom_call.1} parent=1 // pred_check_branch
      %33 = sbr.rel (0) target = $region21
    $region20: #{tpu_custom_call.1} parent=1 // pred_region
      %34 = dma.done [#allocation3], 512
    $region21: #{tpu_custom_call.1} parent=1 // pred_fallthru
      _
    %v35 = vld [vmem:[#allocation2] sm:$0xff]
    %v36 = vld [vmem:[#allocation2 + $0x8] sm:$0xff]
    %v37 = vld [vmem:[#allocation2 + $0x10] sm:$0xff]
    %v38 = vld [vmem:[#allocation2 + $0x18] sm:$0xff]
    %v39 = vld [vmem:[%s0] sm:$0xff]
    %v40 = vld [vmem:[%s2] sm:$0x1]
    %v42 = vlaneseq
    %v43 = vshrl.u32 %v42, 7
    %v44 = vsub.s32 0, %v43
    %v45 = vrot.slane %v40, %v44
    %vm47 = vcmask 261120
    %v49 = vsel %vm47, %v39, 0
    %51 = vmatprep.subr.mxu0 0.0
    %52 = vmatpush1.msra.mxu0 0.0
    %53 = vmatprep.subr.mxu0 0.0
    %54 = vmatpush1.msra.mxu0 0.0
    %55 = vmatprep.subr.mxu0 0.0
    %56 = vmatpush1.msra.mxu0 0.0
    %57 = vmatprep.subr.mxu0 0.0
    %58 = vmatpush1.msra.mxu0 0.0
    %59 = vmatprep.subr.mxu0 0.0
    %60 = vmatpush1.msra.mxu0 0.0
    %61 = vmatprep.subr.mxu0 0.0
    %62 = vmatpush1.msra.mxu0 0.0
    %63 = vmatprep.subr.mxu0 0.0
    %64 = vmatpush1.msra.mxu0 0.0
    %65 = vmatprep.subr.mxu0 0.0
    %66 = vmatpush1.msra.mxu0 0.0
    %67 = vmatprep.subr.mxu0 0.0
    %68 = vmatpush1.msra.mxu0 0.0
    %69 = vmatprep.subr.mxu0 0.0
    %70 = vmatpush1.msra.mxu0 0.0
    %71 = vmatprep.subr.mxu0 0.0
    %72 = vmatpush1.msra.mxu0 0.0
    %73 = vmatprep.subr.mxu0 0.0
    %74 = vmatpush1.msra.mxu0 0.0
    %75 = vmatprep.subr.mxu0 0.0
    %76 = vmatpush1.msra.mxu0 %v38
    %77 = vmatprep.subr.mxu0 0.0
    %78 = vmatpush1.msra.mxu0 %v37
    %79 = vmatprep.subr.mxu0 0.0
    %80 = vmatpush1.msra.mxu0 %v36
    %81 = vmatprep.subr.mxu0 0.0
    %82 = vmatpush1.msra.mxu0 %v35
    %83 = vmatprep.subr.mxu0 0.0
    %84 = vmatpush2.msra.mxu0 0.0
    %85 = vmatprep.subr.mxu0 0.0
    %86 = vmatpush2.msra.mxu0 0.0
    %87 = vmatprep.subr.mxu0 0.0
    %88 = vmatpush2.msra.mxu0 0.0
    %89 = vmatprep.subr.mxu0 0.0
    %90 = vmatpush2.msra.mxu0 0.0
    %91 = vmatprep.subr.mxu0 0.0
    %92 = vmatpush2.msra.mxu0 0.0
    %93 = vmatprep.subr.mxu0 0.0
    %94 = vmatpush2.msra.mxu0 0.0
    %95 = vmatprep.subr.mxu0 0.0
    %96 = vmatpush2.msra.mxu0 0.0
    %97 = vmatprep.subr.mxu0 0.0
    %98 = vmatpush2.msra.mxu0 0.0
    %99 = vmatprep.subr.mxu0 0.0
    %100 = vmatpush2.msra.mxu0 0.0
    %101 = vmatprep.subr.mxu0 0.0
    %102 = vmatpush2.msra.mxu0 0.0
    %103 = vmatprep.subr.mxu0 0.0
    %104 = vmatpush2.msra.mxu0 0.0
    %105 = vmatprep.subr.mxu0 0.0
    %106 = vmatpush2.msra.mxu0 0.0
    %107 = vmatprep.subr.mxu0 0.0
    %108 = vmatpush2.msra.mxu0 0.0
    %109 = vmatprep.subr.mxu0 0.0
    %110 = vmatpush2.msra.mxu0 0.0
    %111 = vmatprep.subr.mxu0 0.0
    %112 = vmatpush2.msra.mxu0 0.0
    %113 = vmatprep.subr.mxu0 0.0
    %114 = vmatpush2.msra.mxu0 0.0
    %115 = vmatprep.mubr.f32.mxu0 0.0
    %116 = vmatmul.mubr.f32.gmra.mxu0 %v49
    %v117 = vpop.f32.mrf.mxu0
    %v118 = vadd.f32 %v45, %v117
    %v119 = vpop.f32.mrf.mxu0
    %120 = vdwg.mxu0
    %121 = vst [vmem:[#allocation5] sm:$0xff] %v118
    %v122 = vld [vmem:[%s3] sm:$0xff]
    %v123 = vmax.f32 %v118, 0.0
    %v124 = vmul.f32 %v118, %v122
    %v125 = vsub.f32 %v123, %v124
    %v126 = vand.u32 2147483647, %v118
    %v127 = vsub.f32 0.0, %v126
    %v128 = vmul.f32 %v127, 1.442695
    %v129 = vpow.pop %v128
    %v130 = vadd.f32 %v129, 1.0
    %v131 = vlog2.pop %v130
    %v132 = vmul.f32 %v131, 0.6931472
    %v133 = vmul.f32 -0.5, %v129
    %v134 = vadd.f32 %v133, 1.0
    %v135 = vmul.f32 %v134, %v129
    %v136 = vand.u32 2147483647, %v129
    %vm137 = vcmp.lt.f32.partialorder %v136, 0.0004427343
    %v138 = vsel %vm137, %v135, %v132
    %v139 = vadd.f32 %v125, %v138
    %s140 = smul.u32 0, 8
    %v141 = vlaneseq
    %v142 = vshrl.u32 %v141, 7
    %v143 = vstv %s140
    %v144 = vadd.s32 %v143, %v142
    %vm145 = vcmp.lt.s32.totalorder %v144, 8
    %v146 = vsel %vm145, %v139, 0.0
    %vm147 = vcmask 15360
    %v148 = vsel %vm147, %v146, 0.0
    %149 = vadd.xlane.f32.xlu0 %v148
    %v150 = vpop.xlane.xlu0 %149
    %v151 = vrot.slane %v150, 4
    %v152 = vadd.f32 %v150, %v151
    %v153 = vrot.slane %v152, 2
    %v154 = vadd.f32 %v152, %v153
    %v155 = vrot.slane %v154, 1
    %v156 = vadd.f32 %v154, %v155
    %s157 = vtos %v156
    %v158 = vstv %s157
    %159 = vst [vmem:[#allocation6] sm:$0x1] %v158
    // Predicated region
    $region22: #{tpu_custom_call.1} parent=1 // pred_check
      _
    $region23: #{tpu_custom_call.1} parent=1 // pred_check_branch
      %161 = sbr.rel (0) target = $region25
    $region24: #{tpu_custom_call.1} parent=1 // pred_region
      %s163 = ssub.s32 128, 128
      %164 = vsyncadd [#allocation4], %s163
      %s166 = sshll.u32 [#allocation5], 4
      %s167 = int_to_ptr.vmem [resolvable:$true] %s166
      %169 = dma.vmem_to_hbm [thread:$0]  %s167, 128, %s4, [#allocation4]
    $region25: #{tpu_custom_call.1} parent=1 // pred_fallthru
      _
    // Predicated region
    $region26: #{tpu_custom_call.1} parent=1 // pred_check
      _
    $region27: #{tpu_custom_call.1} parent=1 // pred_check_branch
      %171 = sbr.rel (0) target = $region29
    $region28: #{tpu_custom_call.1} parent=1 // pred_region
      %s173 = ssub.s32 16, 16
      %174 = vsyncadd [#allocation7], %s173
      %s176 = sshll.u32 [#allocation6], 4
      %s177 = int_to_ptr.vmem [resolvable:$true] %s176
      %179 = dma.vmem_to_hbm [thread:$0]  %s177, 16, %s5, [#allocation7]
    $region29: #{tpu_custom_call.1} parent=1 // pred_fallthru
      _
    // Predicated region
    $region30: #{tpu_custom_call.1} parent=1 // pred_check
      _
    $region31: #{tpu_custom_call.1} parent=1 // pred_check_branch
      %181 = sbr.rel (0) target = $region33
    $region32: #{tpu_custom_call.1} parent=1 // pred_region
      %182 = dma.done [#allocation4], 128
    $region33: #{tpu_custom_call.1} parent=1 // pred_fallthru
      _
    // Predicated region
    $region34: #{tpu_custom_call.1} parent=1 // pred_check
      _
    $region35: #{tpu_custom_call.1} parent=1 // pred_check_branch
      %184 = sbr.rel (0) target = $region37
    $region36: #{tpu_custom_call.1} parent=1 // pred_region
      %185 = dma.done [#allocation7], 16
    $region37: #{tpu_custom_call.1} parent=1 // pred_fallthru
      _
    %186 = vsyncpa [#allocation3], 1
    %187 = vsyncpa [#allocation4], 1
    %188 = vsyncpa [#allocation7], 1

</llo_original>
